<compile_context>
chip_gen: v7x
topology: tpu7x:2x2x1
jax: 0.10.0
libtpu: 0.0.40
codegen_flags: <defaults>
</compile_context>

<pallas_src>
import numpy as np

import jax
import jax.numpy as jnp
from jax.experimental import pallas as pl
from jax.experimental.pallas import tpu as pltpu

INPUT_DIM = 10
HIDDEN_DIM = 20
OUTPUT_DIM = 2
SHARED_DIM = 10
LN_EPS = 1e-5

CAT_IN = 2 * INPUT_DIM       # 20 : [vision | text] input
CAT_HID = 2 * HIDDEN_DIM     # 40 : [vision_features | text_features]
CAT_SH = 3 * SHARED_DIM      # 30 : [vision_specific | text_specific | shared]
HEAD_OUT = 4 * OUTPUT_DIM    # 8  : [vision|text|shared|combined] logits
OUT_WIDTH = 128              # lane-dense output slab width
MAX_TB = 2048                # batch tile (rows per grid step)


def _ru(n, m):
    return ((n + m - 1) // m) * m


def _cdiv(a, b):
    return -(-a // b)


# ---- packed-parameter slab row offsets (weight blocks 8-sublane aligned) ----
R_W1 = 0                                   # (20, 40)  block-diag encoder layer 1
R_W23 = R_W1 + _ru(CAT_IN, 8)              # 24: (40, 30) fused W2 @ W3
R_SEG2 = R_W23 + _ru(CAT_HID, 8)           # 64: (60, 60) LayerNorm segment sums
R_WOUT = _ru(R_SEG2 + 2 * CAT_SH, 8)       # 128: (30, 128) heads + identity
R_VEC = _ru(R_WOUT + CAT_SH, 8)            # 160: 5 bias/LayerNorm vector rows
P_ROWS = _ru(R_VEC + 5, 8)                 # 168
P_LANES = OUT_WIDTH                        # 128


# --------------------------------- kernel ----------------------------------
def cimrl_kernel(vis_ref, txt_ref, p_ref, out_ref):
    f32 = jnp.float32
    bf16 = jnp.bfloat16

    # carve the packed f32 parameter slab (static slices -> free);
    # weights cast to bf16 once per grid step for single-pass MXU pushes.
    w1 = p_ref[R_W1:R_W1 + CAT_IN, :CAT_HID].astype(bf16)               # (20, 40)
    w23 = p_ref[R_W23:R_W23 + CAT_HID, :CAT_SH].astype(bf16)            # (40, 30)
    seg2 = p_ref[R_SEG2:R_SEG2 + 2 * CAT_SH, :2 * CAT_SH].astype(bf16)  # (60, 60) 0/1
    wout = p_ref[R_WOUT:R_WOUT + CAT_SH, :].astype(bf16)                # (30, 128)
    b1 = p_ref[R_VEC + 0:R_VEC + 1, :CAT_HID]                           # (1, 40) f32
    b23 = p_ref[R_VEC + 1:R_VEC + 2, :CAT_SH]                           # (1, 30)
    g3 = p_ref[R_VEC + 2:R_VEC + 3, :CAT_SH]                            # (1, 30)
    be3 = p_ref[R_VEC + 3:R_VEC + 4, :CAT_SH]                           # (1, 30)
    bout = p_ref[R_VEC + 4:R_VEC + 5, :]                                # (1, 128)

    # in-kernel lane concat of the two modalities (no wrapper HBM round trip)
    x = jnp.concatenate([vis_ref[...], txt_ref[...]], axis=-1).astype(bf16)  # (TB,20)

    # fused vision+text encoder layer 1 (block-diagonal W1) + ReLU
    h1 = jnp.maximum(jnp.dot(x, w1, preferred_element_type=f32) + b1, 0.0)

    # encoder layer 2 folded into the projections/shared encoder: W23 = W2 @ W3
    pre = jnp.dot(h1.astype(bf16), w23, preferred_element_type=f32) + b23    # (TB,30)

    # three independent LayerNorms: ONE matmul gives per-segment [sum(x)|sum(x^2)]
    q = jnp.concatenate([pre, pre * pre], axis=-1).astype(bf16)              # (TB,60)
    st = jnp.dot(q, seg2, preferred_element_type=f32) * (1.0 / SHARED_DIM)
    mu = st[:, :CAT_SH]
    var = jnp.maximum(st[:, CAT_SH:] - mu * mu, 0.0)
    acts = jnp.maximum((pre - mu) * jax.lax.rsqrt(var + LN_EPS) * g3 + be3, 0.0)

    # heads + representation passthrough as one lane-dense (TB,128) matmul+store
    out_ref[...] = jnp.dot(acts.astype(bf16), wout,
                           preferred_element_type=f32) + bout


# -------------------------------- wrapper -----------------------------------
def _choose_tiling(B):
    steps = _cdiv(B, MAX_TB)
    if B >= 16:
        steps = max(steps, 2)            # keep both v7x TensorCores busy
        if steps % 2:
            steps += 1
    tb = _ru(_cdiv(B, steps), 8)         # bounds padded rows to < 8 per tile
    b_pad = _ru(B, tb)
    return tb, b_pad, b_pad // tb


@jax.jit
def cimrl_forward(vision, text, packed_params):
    B = vision.shape[0]
    vis = vision.astype(jnp.float32)
    txt = text.astype(jnp.float32)

    tb, b_pad, steps = _choose_tiling(B)
    if b_pad != B:
        vis = jnp.pad(vis, ((0, b_pad - B), (0, 0)))
        txt = jnp.pad(txt, ((0, b_pad - B), (0, 0)))

    flops = 2 * b_pad * (CAT_IN * CAT_HID + CAT_HID * CAT_SH
                         + (2 * CAT_SH) * (2 * CAT_SH) + CAT_SH * OUT_WIDTH)
    bytes_accessed = (packed_params.size
                      + b_pad * (2 * INPUT_DIM + OUT_WIDTH)) * 4

    slab = pl.pallas_call(
        cimrl_kernel,
        out_shape=jax.ShapeDtypeStruct((b_pad, OUT_WIDTH), jnp.float32),
        grid=(steps,),
        in_specs=[
            pl.BlockSpec((tb, INPUT_DIM), lambda i: (i, 0)),        # vision tile
            pl.BlockSpec((tb, INPUT_DIM), lambda i: (i, 0)),        # text tile
            pl.BlockSpec((P_ROWS, P_LANES), lambda i: (0, 0)),      # resident params
        ],
        out_specs=pl.BlockSpec((tb, OUT_WIDTH), lambda i: (i, 0)),
        compiler_params=pltpu.CompilerParams(
            dimension_semantics=("parallel",)),
        cost_estimate=pl.CostEstimate(
            flops=flops, transcendentals=b_pad * CAT_SH,
            bytes_accessed=bytes_accessed),
    )(vis, txt, packed_params)

    slab = slab[:B]
    return {
        "vision_pred": slab[:, 0:OUTPUT_DIM],
        "text_pred": slab[:, OUTPUT_DIM:2 * OUTPUT_DIM],
        "shared_pred": slab[:, 2 * OUTPUT_DIM:3 * OUTPUT_DIM],
        "pred": slab[:, 3 * OUTPUT_DIM:HEAD_OUT],
        "representations": {
            "vision_specific": slab[:, HEAD_OUT:HEAD_OUT + SHARED_DIM],
            "text_specific": slab[:, HEAD_OUT + SHARED_DIM:HEAD_OUT + 2 * SHARED_DIM],
            "shared": slab[:, HEAD_OUT + 2 * SHARED_DIM:HEAD_OUT + CAT_SH],
        },
    }


def cross_entropy_loss(logits, labels):
    # optional 'labels' branch of the torch module, computed in plain JAX glue
    logp = jax.nn.log_softmax(logits, axis=-1)
    return -jnp.mean(jnp.take_along_axis(logp, labels[:, None], axis=-1))


# --------------------------- parameter construction -------------------------
def init_raw_params(key):
    """PyTorch-default-style init (uniform +/- 1/sqrt(fan_in)); weights (in, out)."""
    def lin(k, fi, fo):
        k1, k2 = jax.random.split(k)
        bound = 1.0 / (fi ** 0.5)
        w = jax.random.uniform(k1, (fi, fo), jnp.float32, -bound, bound)
        b = jax.random.uniform(k2, (fo,), jnp.float32, -bound, bound)
        return w, b

    ks = jax.random.split(key, 11)
    p = {}
    p["ve_w1"], p["ve_b1"] = lin(ks[0], INPUT_DIM, HIDDEN_DIM)
    p["ve_w2"], p["ve_b2"] = lin(ks[1], HIDDEN_DIM, HIDDEN_DIM)
    p["te_w1"], p["te_b1"] = lin(ks[2], INPUT_DIM, HIDDEN_DIM)
    p["te_w2"], p["te_b2"] = lin(ks[3], HIDDEN_DIM, HIDDEN_DIM)
    p["vp_w"], p["vp_b"] = lin(ks[4], HIDDEN_DIM, SHARED_DIM)
    p["tp_w"], p["tp_b"] = lin(ks[5], HIDDEN_DIM, SHARED_DIM)
    p["se_w"], p["se_b"] = lin(ks[6], 2 * HIDDEN_DIM, SHARED_DIM)
    p["vh_w"], p["vh_b"] = lin(ks[7], SHARED_DIM, OUTPUT_DIM)
    p["th_w"], p["th_b"] = lin(ks[8], SHARED_DIM, OUTPUT_DIM)
    p["sh_w"], p["sh_b"] = lin(ks[9], SHARED_DIM, OUTPUT_DIM)
    p["ch_w"], p["ch_b"] = lin(ks[10], 3 * SHARED_DIM, OUTPUT_DIM)
    for m in ("vp", "tp", "se"):
        p[f"{m}_g"] = jnp.ones((SHARED_DIM,), jnp.float32)
        p[f"{m}_beta"] = jnp.zeros((SHARED_DIM,), jnp.float32)
    return p


def pack_params(p):
    """Fuse all per-layer params into one (P_ROWS, P_LANES) f32 slab."""
    f32 = jnp.float32

    # layer-1: block-diagonal [ve_w1, te_w1]
    w1 = jnp.zeros((CAT_IN, CAT_HID), f32)
    w1 = w1.at[:INPUT_DIM, :HIDDEN_DIM].set(p["ve_w1"])
    w1 = w1.at[INPUT_DIM:, HIDDEN_DIM:].set(p["te_w1"])
    b1 = jnp.concatenate([p["ve_b1"], p["te_b1"]])

    # layer-2: block-diagonal [ve_w2, te_w2]
    w2 = jnp.zeros((CAT_HID, CAT_HID), f32)
    w2 = w2.at[:HIDDEN_DIM, :HIDDEN_DIM].set(p["ve_w2"])
    w2 = w2.at[HIDDEN_DIM:, HIDDEN_DIM:].set(p["te_w2"])
    b2 = jnp.concatenate([p["ve_b2"], p["te_b2"]])

    # projections + shared encoder
    w3 = jnp.zeros((CAT_HID, CAT_SH), f32)
    w3 = w3.at[:HIDDEN_DIM, 0:SHARED_DIM].set(p["vp_w"])
    w3 = w3.at[HIDDEN_DIM:, SHARED_DIM:2 * SHARED_DIM].set(p["tp_w"])
    w3 = w3.at[:, 2 * SHARED_DIM:].set(p["se_w"])          # cat([vf, tf]) @ se_w
    b3 = jnp.concatenate([p["vp_b"], p["tp_b"], p["se_b"]])

    # fold layer 2 into the projections (no nonlinearity between them)
    w23 = w2 @ w3                                          # (40, 30)
    b23 = b2 @ w3 + b3                                     # (30,)

    g3 = jnp.concatenate([p["vp_g"], p["tp_g"], p["se_g"]])
    be3 = jnp.concatenate([p["vp_beta"], p["tp_beta"], p["se_beta"]])

    # heads
    w4 = jnp.zeros((CAT_SH, HEAD_OUT), f32)
    w4 = w4.at[0:SHARED_DIM, 0:OUTPUT_DIM].set(p["vh_w"])
    w4 = w4.at[SHARED_DIM:2 * SHARED_DIM, OUTPUT_DIM:2 * OUTPUT_DIM].set(p["th_w"])
    w4 = w4.at[2 * SHARED_DIM:, 2 * OUTPUT_DIM:3 * OUTPUT_DIM].set(p["sh_w"])
    w4 = w4.at[:, 3 * OUTPUT_DIM:].set(p["ch_w"])          # cat([vs, ts, sh]) @ ch_w
    b4 = jnp.concatenate([p["vh_b"], p["th_b"], p["sh_b"], p["ch_b"]])

    # heads + identity passthrough -> one lane-dense (30,128) output matrix
    wout = jnp.zeros((CAT_SH, OUT_WIDTH), f32)
    wout = wout.at[:, :HEAD_OUT].set(w4)
    wout = wout.at[:, HEAD_OUT:HEAD_OUT + CAT_SH].set(jnp.eye(CAT_SH, dtype=f32))
    bout = jnp.zeros((OUT_WIDTH,), f32).at[:HEAD_OUT].set(b4)

    # block-diag segment-SUM matrix (exact 0/1 in bf16); doubled for [x | x^2]
    seg = jnp.kron(jnp.eye(3, dtype=f32), jnp.ones((SHARED_DIM, SHARED_DIM), f32))
    seg2 = jnp.kron(jnp.eye(2, dtype=f32), seg)            # (60, 60)

    slab = jnp.zeros((P_ROWS, P_LANES), f32)
    slab = slab.at[R_W1:R_W1 + CAT_IN, :CAT_HID].set(w1)
    slab = slab.at[R_W23:R_W23 + CAT_HID, :CAT_SH].set(w23)
    slab = slab.at[R_SEG2:R_SEG2 + 2 * CAT_SH, :2 * CAT_SH].set(seg2)
    slab = slab.at[R_WOUT:R_WOUT + CAT_SH, :].set(wout)
    slab = slab.at[R_VEC + 0, :CAT_HID].set(b1)
    slab = slab.at[R_VEC + 1, :CAT_SH].set(b23)
    slab = slab.at[R_VEC + 2, :CAT_SH].set(g3)
    slab = slab.at[R_VEC + 3, :CAT_SH].set(be3)
    slab = slab.at[R_VEC + 4, :].set(bout)
    return slab


# --------------------------- pure-JAX reference ------------------------------
def reference_forward(p, vision, text):
    def ln(x, g, b):
        mu = jnp.mean(x, -1, keepdims=True)
        var = jnp.mean((x - mu) ** 2, -1, keepdims=True)
        return (x - mu) * jax.lax.rsqrt(var + LN_EPS) * g + b

    vf = jnp.maximum(vision @ p["ve_w1"] + p["ve_b1"], 0.0) @ p["ve_w2"] + p["ve_b2"]
    tf = jnp.maximum(text @ p["te_w1"] + p["te_b1"], 0.0) @ p["te_w2"] + p["te_b2"]
    vs = jnp.maximum(ln(vf @ p["vp_w"] + p["vp_b"], p["vp_g"], p["vp_beta"]), 0.0)
    ts = jnp.maximum(ln(tf @ p["tp_w"] + p["tp_b"], p["tp_g"], p["tp_beta"]), 0.0)
    sh = jnp.maximum(
        ln(jnp.concatenate([vf, tf], 1) @ p["se_w"] + p["se_b"],
           p["se_g"], p["se_beta"]), 0.0)
    return {
        "vision_pred": vs @ p["vh_w"] + p["vh_b"],
        "text_pred": ts @ p["th_w"] + p["th_b"],
        "shared_pred": sh @ p["sh_w"] + p["sh_b"],
        "pred": jnp.concatenate([vs, ts, sh], 1) @ p["ch_w"] + p["ch_b"],
        "representations": {"vision_specific": vs, "text_specific": ts, "shared": sh},
    }


# ----------------------------------- main ------------------------------------
if __name__ == "__main__":
    key = jax.random.PRNGKey(0)
    k_param, k_vis, k_txt, k_lab = jax.random.split(key, 4)

    B = 8
    vision = jax.random.normal(k_vis, (B, INPUT_DIM), jnp.float32)
    text = jax.random.normal(k_txt, (B, INPUT_DIM), jnp.float32)
    labels = jax.random.randint(k_lab, (B,), 0, OUTPUT_DIM)

    raw_params = init_raw_params(k_param)
    packed_params = pack_params(raw_params)

    outputs = cimrl_forward(vision, text, packed_params)
    outputs["loss"] = cross_entropy_loss(outputs["pred"], labels)
    jax.block_until_ready(outputs)

    # shape sanity
    assert outputs["pred"].shape == (B, OUTPUT_DIM)
    assert outputs["vision_pred"].shape == (B, OUTPUT_DIM)
    assert outputs["representations"]["shared"].shape == (B, SHARED_DIM)

    # numerical sanity vs. an unfused pure-JAX f32 reference of the torch module.
    # Kernel feeds bf16 operands to the MXU (f32 accumulation) per the perf
    # review, so a slightly relaxed tolerance is used.
    ref = reference_forward(raw_params, vision, text)
    for name in ("vision_pred", "text_pred", "shared_pred", "pred"):
        np.testing.assert_allclose(np.asarray(outputs[name]),
                                   np.asarray(ref[name]), rtol=2e-2, atol=2e-2)
    for name in ("vision_specific", "text_specific", "shared"):
        np.testing.assert_allclose(np.asarray(outputs["representations"][name]),
                                   np.asarray(ref["representations"][name]),
                                   rtol=2e-2, atol=2e-2)

    print("KERNEL_OK")
</pallas_src>

<mosaic_0001>
module attributes {stable_mosaic.version = 11 : i64} {
  func.func @cimrl_kernel(%arg0: i32, %arg1: memref<8x10xf32, #tpu.memory_space<vmem>>, %arg2: memref<8x10xf32, #tpu.memory_space<vmem>>, %arg3: memref<168x128xf32, #tpu.memory_space<vmem>>, %arg4: memref<8x128xf32, #tpu.memory_space<vmem>>) attributes {dimension_semantics = [#tpu.dimension_semantics<parallel>], iteration_bounds = array<i64: 1>, scalar_prefetch = 0 : i64, scratch_operands = 0 : i64, tpu.core_type = #tpu.core_type<tc>, window_params = [{transform_indices = @transform_0, window_bounds = array<i64: 8, 10>}, {transform_indices = @transform_1, window_bounds = array<i64: 8, 10>}, {pipeline_mode = #tpu.pipeline_mode<synchronous>, transform_indices = @transform_2, window_bounds = array<i64: 168, 128>}, {transform_indices = @transform_3, window_bounds = array<i64: 8, 128>}]} {
    %c0 = arith.constant 0 : index
    %c0_0 = arith.constant 0 : index
    %0 = vector.load %arg3[%c0, %c0_0] : memref<168x128xf32, #tpu.memory_space<vmem>>, vector<20x40xf32>
    %1 = arith.truncf %0 : vector<20x40xf32> to vector<20x40xbf16>
    %c24 = arith.constant 24 : index
    %c0_1 = arith.constant 0 : index
    %2 = vector.load %arg3[%c24, %c0_1] : memref<168x128xf32, #tpu.memory_space<vmem>>, vector<40x30xf32>
    %3 = arith.truncf %2 : vector<40x30xf32> to vector<40x30xbf16>
    %c64 = arith.constant 64 : index
    %c0_2 = arith.constant 0 : index
    %4 = vector.load %arg3[%c64, %c0_2] : memref<168x128xf32, #tpu.memory_space<vmem>>, vector<60x60xf32>
    %5 = arith.truncf %4 : vector<60x60xf32> to vector<60x60xbf16>
    %c128 = arith.constant 128 : index
    %c0_3 = arith.constant 0 : index
    %6 = vector.load %arg3[%c128, %c0_3] : memref<168x128xf32, #tpu.memory_space<vmem>>, vector<30x128xf32>
    %7 = arith.truncf %6 : vector<30x128xf32> to vector<30x128xbf16>
    %c160 = arith.constant 160 : index
    %c0_4 = arith.constant 0 : index
    %8 = vector.load %arg3[%c160, %c0_4] : memref<168x128xf32, #tpu.memory_space<vmem>>, vector<1x40xf32>
    %c161 = arith.constant 161 : index
    %c0_5 = arith.constant 0 : index
    %9 = vector.load %arg3[%c161, %c0_5] : memref<168x128xf32, #tpu.memory_space<vmem>>, vector<1x30xf32>
    %c162 = arith.constant 162 : index
    %c0_6 = arith.constant 0 : index
    %10 = vector.load %arg3[%c162, %c0_6] : memref<168x128xf32, #tpu.memory_space<vmem>>, vector<1x30xf32>
    %c163 = arith.constant 163 : index
    %c0_7 = arith.constant 0 : index
    %11 = vector.load %arg3[%c163, %c0_7] : memref<168x128xf32, #tpu.memory_space<vmem>>, vector<1x30xf32>
    %c164 = arith.constant 164 : index
    %c0_8 = arith.constant 0 : index
    %12 = vector.load %arg3[%c164, %c0_8] : memref<168x128xf32, #tpu.memory_space<vmem>>, vector<1x128xf32>
    %c0_9 = arith.constant 0 : index
    %c0_10 = arith.constant 0 : index
    %13 = vector.load %arg1[%c0_9, %c0_10] : memref<8x10xf32, #tpu.memory_space<vmem>>, vector<8x10xf32>
    %c0_11 = arith.constant 0 : index
    %c0_12 = arith.constant 0 : index
    %14 = vector.load %arg2[%c0_11, %c0_12] : memref<8x10xf32, #tpu.memory_space<vmem>>, vector<8x10xf32>
    %15 = tpu.concatenate %13, %14 in 1 : vector<8x10xf32>, vector<8x10xf32> -> vector<8x20xf32>
    %16 = arith.truncf %15 : vector<8x20xf32> to vector<8x20xbf16>
    %cst = arith.constant dense<0.000000e+00> : vector<8x40xf32>
    %17 = tpu.matmul %16, %1, %cst {dimension_numbers = #tpu.dot_dimension_numbers<[1], [0], [0], [1], [0, 0, 1, 1], [], []>} : vector<8x20xbf16>, vector<20x40xbf16>, vector<8x40xf32> -> vector<8x40xf32>
    %18 = vector.broadcast %8 : vector<1x40xf32> to vector<8x40xf32>
    %19 = arith.addf %17, %18 : vector<8x40xf32>
    %cst_13 = arith.constant 0.000000e+00 : f32
    %20 = vector.broadcast %cst_13 : f32 to vector<8x40xf32>
    %21 = arith.maximumf %19, %20 : vector<8x40xf32>
    %22 = arith.truncf %21 : vector<8x40xf32> to vector<8x40xbf16>
    %cst_14 = arith.constant dense<0.000000e+00> : vector<8x30xf32>
    %23 = tpu.matmul %22, %3, %cst_14 {dimension_numbers = #tpu.dot_dimension_numbers<[1], [0], [0], [1], [0, 0, 1, 1], [], []>} : vector<8x40xbf16>, vector<40x30xbf16>, vector<8x30xf32> -> vector<8x30xf32>
    %24 = vector.broadcast %9 : vector<1x30xf32> to vector<8x30xf32>
    %25 = arith.addf %23, %24 : vector<8x30xf32>
    %26 = arith.mulf %25, %25 : vector<8x30xf32>
    %27 = tpu.concatenate %25, %26 in 1 : vector<8x30xf32>, vector<8x30xf32> -> vector<8x60xf32>
    %28 = arith.truncf %27 : vector<8x60xf32> to vector<8x60xbf16>
    %cst_15 = arith.constant dense<0.000000e+00> : vector<8x60xf32>
    %29 = tpu.matmul %28, %5, %cst_15 {dimension_numbers = #tpu.dot_dimension_numbers<[1], [0], [0], [1], [0, 0, 1, 1], [], []>} : vector<8x60xbf16>, vector<60x60xbf16>, vector<8x60xf32> -> vector<8x60xf32>
    %cst_16 = arith.constant 1.000000e-01 : f32
    %30 = vector.broadcast %cst_16 : f32 to vector<8x60xf32>
    %31 = arith.mulf %29, %30 : vector<8x60xf32>
    %32 = vector.extract_strided_slice %31 {offsets = [0, 0], sizes = [8, 30], strides = [1, 1]} : vector<8x60xf32> to vector<8x30xf32>
    %33 = vector.extract_strided_slice %31 {offsets = [0, 30], sizes = [8, 30], strides = [1, 1]} : vector<8x60xf32> to vector<8x30xf32>
    %34 = arith.mulf %32, %32 : vector<8x30xf32>
    %35 = arith.subf %33, %34 : vector<8x30xf32>
    %cst_17 = arith.constant 0.000000e+00 : f32
    %36 = vector.broadcast %cst_17 : f32 to vector<8x30xf32>
    %37 = arith.maximumf %35, %36 : vector<8x30xf32>
    %38 = arith.subf %25, %32 : vector<8x30xf32>
    %cst_18 = arith.constant 9.99999974E-6 : f32
    %39 = vector.broadcast %cst_18 : f32 to vector<8x30xf32>
    %40 = arith.addf %37, %39 : vector<8x30xf32>
    %41 = math.rsqrt %40 : vector<8x30xf32>
    %42 = arith.mulf %38, %41 : vector<8x30xf32>
    %43 = vector.broadcast %10 : vector<1x30xf32> to vector<8x30xf32>
    %44 = arith.mulf %42, %43 : vector<8x30xf32>
    %45 = vector.broadcast %11 : vector<1x30xf32> to vector<8x30xf32>
    %46 = arith.addf %44, %45 : vector<8x30xf32>
    %cst_19 = arith.constant 0.000000e+00 : f32
    %47 = vector.broadcast %cst_19 : f32 to vector<8x30xf32>
    %48 = arith.maximumf %46, %47 : vector<8x30xf32>
    %49 = arith.truncf %48 : vector<8x30xf32> to vector<8x30xbf16>
    %cst_20 = arith.constant dense<0.000000e+00> : vector<8x128xf32>
    %50 = tpu.matmul %49, %7, %cst_20 {dimension_numbers = #tpu.dot_dimension_numbers<[1], [0], [0], [1], [0, 0, 1, 1], [], []>} : vector<8x30xbf16>, vector<30x128xbf16>, vector<8x128xf32> -> vector<8x128xf32>
    %51 = vector.broadcast %12 : vector<1x128xf32> to vector<8x128xf32>
    %52 = arith.addf %50, %51 : vector<8x128xf32>
    %c0_21 = arith.constant 0 : index
    %c0_22 = arith.constant 0 : index
    %53 = vector.load %arg4[%c0_21, %c0_22] : memref<8x128xf32, #tpu.memory_space<vmem>>, vector<8x128xf32>
    tpu.vector_store %arg4[%c0_21, %c0_22], %52 {strides = array<i32>} : memref<8x128xf32, #tpu.memory_space<vmem>>, vector<8x128xf32>,
    return
  }
  func.func @transform_0(%arg0: i32) -> (i32, i32) {
    %c0_i32 = arith.constant 0 : i32
    %c0_i32_0 = arith.constant 0 : i32
    return %arg0, %c0_i32 : i32, i32
  }
  func.func @transform_1(%arg0: i32) -> (i32, i32) {
    %c0_i32 = arith.constant 0 : i32
    %c0_i32_0 = arith.constant 0 : i32
    return %arg0, %c0_i32 : i32, i32
  }
  func.func @transform_2(%arg0: i32) -> (i32, i32) {
    %c0_i32 = arith.constant 0 : i32
    %c0_i32_0 = arith.constant 0 : i32
    %c0_i32_1 = arith.constant 0 : i32
    return %c0_i32, %c0_i32_0 : i32, i32
  }
  func.func @transform_3(%arg0: i32) -> (i32, i32) {
    %c0_i32 = arith.constant 0 : i32
    %c0_i32_0 = arith.constant 0 : i32
    return %arg0, %c0_i32 : i32, i32
  }
}

</mosaic_0001>

<llo_original>
// kernel: cimrl_forward.1
$region0: #{cimrl_forward.1}
  #allocation0 [shape = 'u32[]', space=smem, size = 0x4, offset = 0x4, fixed_abs, tag = 'smem constant byte address 0x4 - core index']
  #allocation1 [shape = 'u32[144,128]{1,0:T(1,128)}', space=vmem, size = 0x12000, scoped, tag = 'internal scratch']
  %s0 = inlined_call_operand.hbm [shape: f32[8,10], index: 0, kind: input, shape index: {}]
  %s1 = inlined_call_operand.hbm [shape: f32[8,10], index: 1, kind: input, shape index: {}]
  %s2 = inlined_call_operand.hbm [shape: f32[168,128], index: 2, kind: input, shape index: {}]
  %s3 = inlined_call_operand.vmem [shape: f32[8,128], index: 3, kind: output, shape index: {}]
  %s4 = sld [smem:[#allocation0]]
  $region34: #{cimrl_forward.1} parent=0
    _
  %s6 = ssub.s32 1, %s4
  %s7 = scalar_select 0, %s6, %s4
  $region1: #{cimrl_forward.1} parent=0
    #allocation2 [shape = 'u8[4096]{0}', space=vmem, size = 0x1000, scoped, tag = 'input window, operand 0, single buffered']
    #allocation3 [shape = 's32[1]{0}', space=sflag, size = 0x4, scoped, tag = 'scoped memory for cimrl_forward.1']
    #allocation4 [shape = 'u8[4096]{0}', space=vmem, size = 0x1000, scoped, tag = 'input window, operand 1, single buffered']
    #allocation5 [shape = 's32[1]{0}', space=sflag, size = 0x4, scoped, tag = 'scoped memory for cimrl_forward.1']
    #allocation6 [shape = 'u8[86016]{0}', space=vmem, size = 0x15000, scoped, tag = 'input window, operand 2, single buffered']
    %8 = vsyncpa [#allocation3], 0
    %9 = vsyncpa [#allocation5], 0
    // Predicated region
    $region2: #{cimrl_forward.1} parent=1 // pred_check
      _
    $region3: #{cimrl_forward.1} parent=1 // pred_check_branch
      %11 = sbr.rel (0) target = $region5
    $region4: #{cimrl_forward.1} parent=1 // pred_region
      %s13 = ssub.s32 128, 128
      %14 = vsyncadd [#allocation3], %s13
      %s16 = sshll.u32 [#allocation2], 4
      %s17 = int_to_ptr.vmem [resolvable:$true] %s16
      %19 = dma.hbm_to_vmem [thread:$0]  %s0, 128, %s17, [#allocation3]
    $region5: #{cimrl_forward.1} parent=1 // pred_fallthru
      _
    // Predicated region
    $region6: #{cimrl_forward.1} parent=1 // pred_check
      _
    $region7: #{cimrl_forward.1} parent=1 // pred_check_branch
      %21 = sbr.rel (0) target = $region9
    $region8: #{cimrl_forward.1} parent=1 // pred_region
      %s23 = ssub.s32 128, 128
      %24 = vsyncadd [#allocation5], %s23
      %s26 = sshll.u32 [#allocation4], 4
      %s27 = int_to_ptr.vmem [resolvable:$true] %s26
      %29 = dma.hbm_to_vmem [thread:$0]  %s1, 128, %s27, [#allocation5]
    $region9: #{cimrl_forward.1} parent=1 // pred_fallthru
      _
    // Predicated region
    $region10: #{cimrl_forward.1} parent=1 // pred_check
      _
    $region11: #{cimrl_forward.1} parent=1 // pred_check_branch
      %31 = sbr.rel (0) target = $region13
    $region12: #{cimrl_forward.1} parent=1 // pred_region
      %s33 = ssub.s32 2688, 2688
      %34 = vsyncadd [#allocation5], %s33
      %s35 = sshll.u32 [#allocation6], 4
      %s36 = int_to_ptr.vmem [resolvable:$true] %s35
      %41 = dma.hbm_to_vmem [thread:$0]  %s2, 2688, %s36, [#allocation5], 128, 128, 8
    $region13: #{cimrl_forward.1} parent=1 // pred_fallthru
      _
    // Predicated region
    $region14: #{cimrl_forward.1} parent=1 // pred_check
      _
    $region15: #{cimrl_forward.1} parent=1 // pred_check_branch
      %43 = sbr.rel (0) target = $region17
    $region16: #{cimrl_forward.1} parent=1 // pred_region
      %44 = dma.done [#allocation3], 128
    $region17: #{cimrl_forward.1} parent=1 // pred_fallthru
      _
    // Predicated region
    $region18: #{cimrl_forward.1} parent=1 // pred_check
      _
    $region19: #{cimrl_forward.1} parent=1 // pred_check_branch
      %46 = sbr.rel (0) target = $region21
    $region20: #{cimrl_forward.1} parent=1 // pred_region
      %47 = dma.done [#allocation5], 128
    $region21: #{cimrl_forward.1} parent=1 // pred_fallthru
      _
    // Predicated region
    $region22: #{cimrl_forward.1} parent=1 // pred_check
      _
    $region23: #{cimrl_forward.1} parent=1 // pred_check_branch
      %49 = sbr.rel (0) target = $region25
    $region24: #{cimrl_forward.1} parent=1 // pred_region
      %50 = dma.done [#allocation5], 2688
    $region25: #{cimrl_forward.1} parent=1 // pred_fallthru
      _
    %v52 = vld [vmem:[#allocation6] sm:$0xff]
    %v53 = vld [vmem:[#allocation6 + $0x8] sm:$0xff]
    %v54 = vld [vmem:[#allocation6 + $0x10] sm:$0xf]
    %v55 = vpack.c.bf16 %v53, %v52
    %v56 = vpack.c.bf16 %v54, %v54
    %v57 = vld [vmem:[#allocation6 + $0x18] sm:$0xff]
    %v58 = vld [vmem:[#allocation6 + $0x20] sm:$0xff]
    %v59 = vld [vmem:[#allocation6 + $0x28] sm:$0xff]
    %v60 = vld [vmem:[#allocation6 + $0x30] sm:$0xff]
    %v61 = vld [vmem:[#allocation6 + $0x38] sm:$0xff]
    %v62 = vpack.c.bf16 %v58, %v57
    %v63 = vpack.c.bf16 %v60, %v59
    %v64 = vpack.c.bf16 %v61, %v61
    %v65 = vld [vmem:[#allocation6 + $0x40] sm:$0xff]
    %v66 = vld [vmem:[#allocation6 + $0x48] sm:$0xff]
    %v67 = vld [vmem:[#allocation6 + $0x50] sm:$0xff]
    %v68 = vld [vmem:[#allocation6 + $0x58] sm:$0xff]
    %v69 = vld [vmem:[#allocation6 + $0x60] sm:$0xff]
    %v70 = vld [vmem:[#allocation6 + $0x68] sm:$0xff]
    %v71 = vld [vmem:[#allocation6 + $0x70] sm:$0xff]
    %v72 = vld [vmem:[#allocation6 + $0x78] sm:$0xf]
    %v73 = vpack.c.bf16 %v66, %v65
    %v74 = vpack.c.bf16 %v68, %v67
    %v75 = vpack.c.bf16 %v70, %v69
    %v76 = vpack.c.bf16 %v72, %v71
    %v77 = vld [vmem:[#allocation6 + $0x80] sm:$0xff]
    %v78 = vld [vmem:[#allocation6 + $0x88] sm:$0xff]
    %v79 = vld [vmem:[#allocation6 + $0x90] sm:$0xff]
    %v80 = vld [vmem:[#allocation6 + $0x98] sm:$0x3f]
    %v81 = vpack.c.bf16 %v78, %v77
    %v82 = vpack.c.bf16 %v80, %v79
    %v83 = vld [vmem:[#allocation6 + $0xa0] sm:$0x1]
    %v84 = vld [vmem:[#allocation6 + $0xa1] sm:$0x1]
    %v85 = vld [vmem:[#allocation6 + $0xa2] sm:$0x1]
    %v86 = vld [vmem:[#allocation6 + $0xa3] sm:$0x1]
    %v87 = vld [vmem:[#allocation6 + $0xa4] sm:$0x1]
    %v88 = vld [vmem:[#allocation2] sm:$0xff]
    %v89 = vld [vmem:[#allocation4] sm:$0xff]
    %91 = vrot.lane.b32.xlu0 %v89, 10
    %v92 = vpop.permute.xlu0 %91
    %vm94 = vcmask 80896
    %v95 = vsel %vm94, %v88, %v92
    %v96 = vpack.c.bf16 %v95, %v95
    %v97 = vlaneseq
    %v98 = vshrl.u32 %v97, 7
    %v99 = vsub.s32 0, %v98
    %v100 = vrot.slane %v83, %v99
    %vm101 = vcmask 162816
    %v103 = vsel %vm101, %v96, 0
    %vm105 = vcmask 1041408
    %v107 = vsel %vm105, %v56, 0
    %109 = vmatprep.subr.bf16.mxu0 0
    %110 = vmatpush1.bf16.msra.mxu0 %v55
    %111 = vmatprep.subr.bf16.mxu0 0
    %112 = vmatpush1.bf16.msra.mxu0 %v107
    %113 = vmatprep.subr.bf16.mxu0 0
    %114 = vmatpush1.bf16.msra.mxu0 0
    %115 = vmatprep.subr.bf16.mxu0 0
    %116 = vmatpush1.bf16.msra.mxu0 0
    %117 = vmatprep.subr.bf16.mxu0 0
    %118 = vmatpush1.bf16.msra.mxu0 0
    %119 = vmatprep.subr.bf16.mxu0 0
    %120 = vmatpush1.bf16.msra.mxu0 0
    %121 = vmatprep.subr.bf16.mxu0 0
    %122 = vmatpush1.bf16.msra.mxu0 0
    %123 = vmatprep.subr.bf16.mxu0 0
    %124 = vmatpush1.bf16.msra.mxu0 0
    %125 = vmatprep.subr.bf16.mxu0 0
    %126 = vmatpush1.bf16.msra.mxu0 0
    %127 = vmatprep.subr.bf16.mxu0 0
    %128 = vmatpush1.bf16.msra.mxu0 0
    %129 = vmatprep.subr.bf16.mxu0 0
    %130 = vmatpush1.bf16.msra.mxu0 0
    %131 = vmatprep.subr.bf16.mxu0 0
    %132 = vmatpush1.bf16.msra.mxu0 0
    %133 = vmatprep.subr.bf16.mxu0 0
    %134 = vmatpush1.bf16.msra.mxu0 0
    %135 = vmatprep.subr.bf16.mxu0 0
    %136 = vmatpush1.bf16.msra.mxu0 0
    %137 = vmatprep.subr.bf16.mxu0 0
    %138 = vmatpush1.bf16.msra.mxu0 0
    %139 = vmatprep.subr.bf16.mxu0 0
    %140 = vmatpush1.bf16.msra.mxu0 0
    %141 = vmatprep.mubr.bf16.mxu0 0
    %142 = vmatmul.mubr.bf16.gmra.mrb[0].mxu0 %v103
    %v143 = vpop.f32.mrb[0].mxu0
    %v144 = vadd.f32 %v100, %v143
    %v145 = vpop.f32.mrb[0].mxu0
    %v146 = vpop.f32.mrb[0].mxu0
    %v147 = vpop.f32.mrb[0].mxu0
    %148 = vdwg.mxu0
    %v149 = vmax.f32 %v144, 0.0
    %v150 = vpack.c.bf16 %v149, %v149
    %v151 = vlaneseq
    %v152 = vshrl.u32 %v151, 7
    %v153 = vsub.s32 0, %v152
    %v154 = vrot.slane %v84, %v153
    %vm155 = vcmask 326656
    %v157 = vsel %vm155, %v150, 0
    %vm159 = vcmask 1043456
    %v161 = vsel %vm159, %v64, 0
    %163 = vmatprep.subr.bf16.mxu0 0
    %164 = vmatpush1.bf16.msra.mxu0 %v62
    %165 = vmatprep.subr.bf16.mxu0 0
    %166 = vmatpush1.bf16.msra.mxu0 %v63
    %167 = vmatprep.subr.bf16.mxu0 0
    %168 = vmatpush1.bf16.msra.mxu0 %v161
    %169 = vmatprep.subr.bf16.mxu0 0
    %170 = vmatpush1.bf16.msra.mxu0 0
    %171 = vmatprep.subr.bf16.mxu0 0
    %172 = vmatpush1.bf16.msra.mxu0 0
    %173 = vmatprep.subr.bf16.mxu0 0
    %174 = vmatpush1.bf16.msra.mxu0 0
    %175 = vmatprep.subr.bf16.mxu0 0
    %176 = vmatpush1.bf16.msra.mxu0 0
    %177 = vmatprep.subr.bf16.mxu0 0
    %178 = vmatpush1.bf16.msra.mxu0 0
    %179 = vmatprep.subr.bf16.mxu0 0
    %180 = vmatpush1.bf16.msra.mxu0 0
    %181 = vmatprep.subr.bf16.mxu0 0
    %182 = vmatpush1.bf16.msra.mxu0 0
    %183 = vmatprep.subr.bf16.mxu0 0
    %184 = vmatpush1.bf16.msra.mxu0 0
    %185 = vmatprep.subr.bf16.mxu0 0
    %186 = vmatpush1.bf16.msra.mxu0 0
    %187 = vmatprep.subr.bf16.mxu0 0
    %188 = vmatpush1.bf16.msra.mxu0 0
    %189 = vmatprep.subr.bf16.mxu0 0
    %190 = vmatpush1.bf16.msra.mxu0 0
    %191 = vmatprep.subr.bf16.mxu0 0
    %192 = vmatpush1.bf16.msra.mxu0 0
    %193 = vmatprep.subr.bf16.mxu0 0
    %194 = vmatpush1.bf16.msra.mxu0 0
    %195 = vmatprep.mubr.bf16.mxu0 0
    %196 = vmatmul.mubr.bf16.gmra.mrb[0].mxu0 %v157
    %v197 = vpop.f32.mrb[0].mxu0
    %v198 = vadd.f32 %v154, %v197
    %v199 = vpop.f32.mrb[0].mxu0
    %v200 = vpop.f32.mrb[0].mxu0
    %v201 = vpop.f32.mrb[0].mxu0
    %202 = vdwg.mxu0
    %v203 = vmul.f32 %v198, %v198
    %205 = vrot.lane.b32.xlu0 %v203, 30
    %v206 = vpop.permute.xlu0 %205
    %vm208 = vcmask 244736
    %v209 = vsel %vm208, %v198, %v206
    %v210 = vpack.c.bf16 %v209, %v209
    %vm211 = vcmask 490496
    %v213 = vsel %vm211, %v210, 0
    %vm215 = vcmask 1045504
    %v217 = vsel %vm215, %v76, 0
    %219 = vmatprep.subr.bf16.mxu0 0
    %220 = vmatpush1.bf16.msra.mxu0 %v73
    %221 = vmatprep.subr.bf16.mxu0 0
    %222 = vmatpush1.bf16.msra.mxu0 %v74
    %223 = vmatprep.subr.bf16.mxu0 0
    %224 = vmatpush1.bf16.msra.mxu0 %v75
    %225 = vmatprep.subr.bf16.mxu0 0
    %226 = vmatpush1.bf16.msra.mxu0 %v217
    %227 = vmatprep.subr.bf16.mxu0 0
    %228 = vmatpush1.bf16.msra.mxu0 0
    %229 = vmatprep.subr.bf16.mxu0 0
    %230 = vmatpush1.bf16.msra.mxu0 0
    %231 = vmatprep.subr.bf16.mxu0 0
    %232 = vmatpush1.bf16.msra.mxu0 0
    %233 = vmatprep.subr.bf16.mxu0 0
    %234 = vmatpush1.bf16.msra.mxu0 0
    %235 = vmatprep.subr.bf16.mxu0 0
    %236 = vmatpush1.bf16.msra.mxu0 0
    %237 = vmatprep.subr.bf16.mxu0 0
    %238 = vmatpush1.bf16.msra.mxu0 0
    %239 = vmatprep.subr.bf16.mxu0 0
    %240 = vmatpush1.bf16.msra.mxu0 0
    %241 = vmatprep.subr.bf16.mxu0 0
    %242 = vmatpush1.bf16.msra.mxu0 0
    %243 = vmatprep.subr.bf16.mxu0 0
    %244 = vmatpush1.bf16.msra.mxu0 0
    %245 = vmatprep.subr.bf16.mxu0 0
    %246 = vmatpush1.bf16.msra.mxu0 0
    %247 = vmatprep.subr.bf16.mxu0 0
    %248 = vmatpush1.bf16.msra.mxu0 0
    %249 = vmatprep.subr.bf16.mxu0 0
    %250 = vmatpush1.bf16.msra.mxu0 0
    %251 = vmatprep.mubr.bf16.mxu0 0
    %252 = vmatmul.mubr.bf16.gmra.mrb[0].mxu0 %v213
    %v253 = vpop.f32.mrb[0].mxu0
    %v254 = vadd.f32 0.0, %v253
    %v255 = vpop.f32.mrb[0].mxu0
    %v256 = vpop.f32.mrb[0].mxu0
    %v257 = vpop.f32.mrb[0].mxu0
    %258 = vdwg.mxu0
    %v259 = vmul.f32 %v254, 0.1
    %v260 = vmul.f32 %v259, %v259
    %262 = vrot.lane.b32.xlu0 %v260, 30
    %v263 = vpop.permute.xlu0 %262
    %v265 = vsub.f32 %v259, %v263
    %v266 = vmax.f32 %v265, 0.0
    %v267 = vsub.f32 %v198, %v259
    %v268 = vadd.f32 %v266, 1e-05
    %v269 = vrsqrt.pop %v268
    %271 = vrot.lane.b32.xlu0 %v269, 98
    %v272 = vpop.permute.xlu0 %271
    %v274 = vmul.f32 %v267, %v272
    %v275 = vlaneseq
    %v276 = vshrl.u32 %v275, 7
    %v277 = vsub.s32 0, %v276
    %v278 = vrot.slane %v85, %v277
    %v279 = vmul.f32 %v274, %v278
    %v280 = vlaneseq
    %v281 = vshrl.u32 %v280, 7
    %v282 = vsub.s32 0, %v281
    %v283 = vrot.slane %v86, %v282
    %v284 = vadd.f32 %v279, %v283
    %v285 = vmax.f32 %v284, 0.0
    %v286 = vpack.c.bf16 %v285, %v285
    %v287 = vlaneseq
    %v288 = vshrl.u32 %v287, 7
    %v289 = vsub.s32 0, %v288
    %v290 = vrot.slane %v87, %v289
    %v292 = vsel %vm208, %v286, 0
    %vm294 = vcmask 1046528
    %v296 = vsel %vm294, %v82, 0
    %298 = vmatprep.subr.bf16.mxu0 0
    %299 = vmatpush1.bf16.msra.mxu0 %v81
    %300 = vmatprep.subr.bf16.mxu0 0
    %301 = vmatpush1.bf16.msra.mxu0 %v296
    %302 = vmatprep.subr.bf16.mxu0 0
    %303 = vmatpush1.bf16.msra.mxu0 0
    %304 = vmatprep.subr.bf16.mxu0 0
    %305 = vmatpush1.bf16.msra.mxu0 0
    %306 = vmatprep.subr.bf16.mxu0 0
    %307 = vmatpush1.bf16.msra.mxu0 0
    %308 = vmatprep.subr.bf16.mxu0 0
    %309 = vmatpush1.bf16.msra.mxu0 0
    %310 = vmatprep.subr.bf16.mxu0 0
    %311 = vmatpush1.bf16.msra.mxu0 0
    %312 = vmatprep.subr.bf16.mxu0 0
    %313 = vmatpush1.bf16.msra.mxu0 0
    %314 = vmatprep.subr.bf16.mxu0 0
    %315 = vmatpush1.bf16.msra.mxu0 0
    %316 = vmatprep.subr.bf16.mxu0 0
    %317 = vmatpush1.bf16.msra.mxu0 0
    %318 = vmatprep.subr.bf16.mxu0 0
    %319 = vmatpush1.bf16.msra.mxu0 0
    %320 = vmatprep.subr.bf16.mxu0 0
    %321 = vmatpush1.bf16.msra.mxu0 0
    %322 = vmatprep.subr.bf16.mxu0 0
    %323 = vmatpush1.bf16.msra.mxu0 0
    %324 = vmatprep.subr.bf16.mxu0 0
    %325 = vmatpush1.bf16.msra.mxu0 0
    %326 = vmatprep.subr.bf16.mxu0 0
    %327 = vmatpush1.bf16.msra.mxu0 0
    %328 = vmatprep.subr.bf16.mxu0 0
    %329 = vmatpush1.bf16.msra.mxu0 0
    %330 = vmatprep.mubr.bf16.mxu0 0
    %331 = vmatmul.mubr.bf16.gmra.mrb[0].mxu0 %v292
    %v332 = vpop.f32.mrb[0].mxu0
    %v333 = vadd.f32 %v290, %v332
    %v334 = vpop.f32.mrb[0].mxu0
    %v335 = vpop.f32.mrb[0].mxu0
    %v336 = vpop.f32.mrb[0].mxu0
    %337 = vdwg.mxu0
    %338 = vst [vmem:[%s3] sm:$0xff] %v333
    // Predicated region
    $region26: #{cimrl_forward.1} parent=1 // pred_check
      _
    $region27: #{cimrl_forward.1} parent=1 // pred_check_branch
      %340 = sbr.rel (0) target = $region29
    $region28: #{cimrl_forward.1} parent=1 // pred_region
      _
    $region29: #{cimrl_forward.1} parent=1 // pred_fallthru
      _
    // Predicated region
    $region30: #{cimrl_forward.1} parent=1 // pred_check
      _
    $region31: #{cimrl_forward.1} parent=1 // pred_check_branch
      %342 = sbr.rel (0) target = $region33
    $region32: #{cimrl_forward.1} parent=1 // pred_region
      _
    $region33: #{cimrl_forward.1} parent=1 // pred_fallthru
      _
    %343 = vsyncpa [#allocation3], 1
    %344 = vsyncpa [#allocation5], 1

</llo_original>
